<compile_context>
chip_gen: v7x
topology: tpu7x:2x2x1
jax: 0.10.0
libtpu: 0.0.40
codegen_flags: <defaults>
</compile_context>

<pallas_src>
import functools

import jax
import jax.numpy as jnp
import numpy as np
from jax import lax
from jax.experimental import pallas as pl
from jax.experimental.pallas import tpu as pltpu


def _ceil_div(a, b):
    return -(-a // b)


def _num_tensorcores():
    """Best-effort TensorCores-per-chip; defaults to 1 (safe serial path)."""
    try:
        info = pltpu.get_tpu_info()
    except Exception:
        return 1
    for attr in ("num_cores", "core_count", "tensorcore_count", "num_tensorcores"):
        v = getattr(info, attr, None)
        if isinstance(v, int) and v >= 1:
            return v
    return 1


def _vmem_capacity_bytes():
    """Best-effort physical VMEM per core; defaults to 64 MiB (v7x, conservative)."""
    try:
        info = pltpu.get_tpu_info()
        v = getattr(info, "vmem_capacity_bytes", None)
        if isinstance(v, int) and v > 0:
            return v
    except Exception:
        pass
    return 64 * 1024 * 1024


def _entropy_kernel(x_ref, o_ref, acc_ref, *, batch_size, tile_b, tiles_per_split):
    p = pl.program_id(0)          # megacore split (size 1 or 2)
    i = pl.program_id(1)          # sequential reduction over batch tiles

    @pl.when(i == 0)
    def _():
        acc_ref[...] = jnp.zeros_like(acc_ref)

    x = x_ref[...].astype(jnp.float32)                     # (tile_b, C)
    m = jnp.max(x, axis=1, keepdims=True)                  # row max for stability
    z = x - m
    ez = jnp.exp(z)
    s = jnp.sum(ez, axis=1, keepdims=True)                 # (tile_b, 1), s >= 1
    t = jnp.sum(ez * z, axis=1, keepdims=True)             # (tile_b, 1)
    row = t / s - jnp.log(s)                               # per-row sum(p * log p)

    # Mask rows past the true batch (partial boundary tile). Every op above is
    # row-local and jnp.where is a select, so garbage in padded boundary rows
    # cannot leak into the accumulator.
    g = p * tiles_per_split + i                            # logical tile index
    ridx = g * tile_b + lax.broadcasted_iota(jnp.int32, (tile_b, 1), 0)
    row = jnp.where(ridx < batch_size, row, jnp.float32(0.0))

    # Scalar accumulation: a single cross-sublane reduce per tile.
    acc_ref[...] += jnp.sum(row, keepdims=True)            # (1, 1)

    @pl.when(i == pl.num_programs(1) - 1)
    def _():
        o_ref[...] = acc_ref[...]


def entropy_loss(x, *, tile_b=None):
    """Pallas implementation of EntropyLoss.forward (softmax entropy over dim 1)."""
    if x.ndim < 2:
        raise ValueError("EntropyLoss expects at least 2-D logits")
    orig_batch = x.shape[0]
    if x.ndim > 2:
        # softmax is over dim 1; fold every other axis into rows, keep C last.
        x2 = jnp.moveaxis(x, 1, -1).reshape(-1, x.shape[1])
    else:
        x2 = x
    if orig_batch == 0:
        return jnp.float32(np.nan)          # matches 0-element sum / 0 in PyTorch
    if x2.shape[0] == 0:
        return jnp.float32(0.0)

    B, C = x2.shape
    itemsize = jnp.dtype(x2.dtype).itemsize
    pack = max(8, 32 // itemsize)                          # 8 f32, 16 bf16, 32 int8/fp8

    vmem_cap = _vmem_capacity_bytes()
    # 128 MiB parts (v5e/v6e) can afford a higher scoped limit than 64 MiB v7x.
    vmem_limit = 64 * 1024 * 1024 if vmem_cap >= 96 * 1024 * 1024 else 48 * 1024 * 1024

    in_row_bytes = C * itemsize
    f32_row_bytes = C * 4
    if tile_b is None:
        # ~7 MiB per input buffer, bounded by a VMEM budget that accounts for
        # the double-buffered input plus ~4 f32-tile-sized elementwise temps.
        per_row_cost = 2 * in_row_bytes + 4 * f32_row_bytes
        budget_rows = max(pack, int(0.75 * vmem_limit) // per_row_cost)
        target_rows = max(pack, (7 * 1024 * 1024) // in_row_bytes)
        tile_b = min(target_rows, budget_rows)
    tile_b = int(tile_b)
    if tile_b >= B:
        tile_b = B                           # single tile; full-dim block is always legal
    else:
        tile_b = max(pack, (tile_b // pack) * pack)
        tile_b = min(tile_b, B)

    num_tiles = _ceil_div(B, tile_b)

    # 2-way megacore split only when there really are 2 TensorCores and the
    # tiles split evenly (balanced halves, no clamped/duplicated dummy tile).
    n_splits = 2 if (_num_tensorcores() >= 2 and num_tiles >= 2 and num_tiles % 2 == 0) else 1
    tiles_per_split = num_tiles // n_splits

    cost = pl.CostEstimate(
        flops=6 * B * C,
        transcendentals=B * C + B,
        bytes_accessed=B * C * itemsize + n_splits * 4,
    )

    out = pl.pallas_call(
        functools.partial(
            _entropy_kernel,
            batch_size=B,
            tile_b=tile_b,
            tiles_per_split=tiles_per_split,
        ),
        out_shape=jax.ShapeDtypeStruct((n_splits, 1, 1), jnp.float32),
        grid_spec=pltpu.PrefetchScalarGridSpec(
            num_scalar_prefetch=0,
            grid=(n_splits, tiles_per_split),
            in_specs=[pl.BlockSpec((tile_b, C),
                                   lambda p, i: (p * tiles_per_split + i, 0))],
            out_specs=pl.BlockSpec((None, 1, 1), lambda p, i: (p, 0, 0)),
            scratch_shapes=[pltpu.VMEM((1, 1), jnp.float32)],
        ),
        compiler_params=pltpu.CompilerParams(
            dimension_semantics=("parallel", "arbitrary"),
            vmem_limit_bytes=vmem_limit,
        ),
        cost_estimate=cost,
    )(x2)

    # Combine the per-core partials and normalize by the batch size.
    return jnp.sum(out) / jnp.float32(orig_batch)


def _entropy_loss_ref(x):
    xf = x.astype(jnp.float32)
    sm = jax.nn.softmax(xf, axis=1)
    lsm = jax.nn.log_softmax(xf, axis=1)
    return jnp.sum(sm * lsm) / x.shape[0]


if __name__ == "__main__":
    key = jax.random.PRNGKey(0)

    # Classifier-head sized logits (domain_disentangle): (batch, num_classes).
    B, C = 8, 32
    x = jax.random.normal(key, (B, C), dtype=jnp.float32)
    out = jax.block_until_ready(entropy_loss(x))
    ref = jax.block_until_ready(_entropy_loss_ref(x))
    assert np.allclose(np.asarray(out), np.asarray(ref), rtol=1e-5, atol=1e-5), (out, ref)

    # Non-divisible batch + multi-tile sequential reduction path.
    x2 = jax.random.normal(jax.random.PRNGKey(0), (24, 32), dtype=jnp.float32)
    out2 = jax.block_until_ready(entropy_loss(x2, tile_b=16))
    ref2 = jax.block_until_ready(_entropy_loss_ref(x2))
    assert np.allclose(np.asarray(out2), np.asarray(ref2), rtol=1e-5, atol=1e-5), (out2, ref2)

    # bf16 logits exercise the dtype-aware sublane packing (pack = 16).
    x3 = jax.random.normal(jax.random.PRNGKey(0), (100, 160), dtype=jnp.bfloat16)
    out3 = jax.block_until_ready(entropy_loss(x3, tile_b=32))
    ref3 = jax.block_until_ready(_entropy_loss_ref(x3))
    assert np.allclose(np.asarray(out3), np.asarray(ref3), rtol=1e-4, atol=1e-4), (out3, ref3)

    print("KERNEL_OK")
</pallas_src>

<mosaic_0001>
module attributes {stable_mosaic.version = 11 : i64} {
  func.func @_entropy_kernel(%arg0: i32, %arg1: i32, %arg2: memref<8x32xf32, #tpu.memory_space<vmem>>, %arg3: memref<1x1x1xf32, #tpu.memory_space<vmem>>, %arg4: memref<1x1xf32, #tpu.memory_space<vmem>>) attributes {dimension_semantics = [#tpu.dimension_semantics<parallel>, #tpu.dimension_semantics<arbitrary>], iteration_bounds = array<i64: 1, 1>, scalar_prefetch = 0 : i64, scratch_operands = 1 : i64, tpu.core_type = #tpu.core_type<tc>, window_params = [{transform_indices = @transform_0, window_bounds = array<i64: 8, 32>}, {transform_indices = @transform_1, window_bounds = array<i64: 1, 1, 1>}]} {
    %c0_i32 = arith.constant 0 : i32
    %0 = arith.cmpi eq, %arg1, %c0_i32 : i32
    %1 = arith.extui %0 : i1 to i32
    %c0_i32_0 = arith.constant 0 : i32
    %2 = arith.cmpi ne, %1, %c0_i32_0 : i32
    scf.if %2 {
      %cst_13 = arith.constant 0.000000e+00 : f32
      %38 = vector.broadcast %cst_13 : f32 to vector<1x1xf32>
      %c0_14 = arith.constant 0 : index
      %c0_15 = arith.constant 0 : index
      %39 = vector.load %arg4[%c0_14, %c0_15] : memref<1x1xf32, #tpu.memory_space<vmem>>, vector<1x1xf32>
      tpu.vector_store %arg4[%c0_14, %c0_15], %38 {strides = array<i32>} : memref<1x1xf32, #tpu.memory_space<vmem>>, vector<1x1xf32>,
    } else {
    }
    %c0 = arith.constant 0 : index
    %c0_1 = arith.constant 0 : index
    %3 = vector.load %arg2[%c0, %c0_1] : memref<8x32xf32, #tpu.memory_space<vmem>>, vector<8x32xf32>
    %cst = arith.constant dense<0xFF800000> : vector<8xf32>
    %4 = vector.multi_reduction <maximumf>, %3, %cst [1] : vector<8x32xf32> to vector<8xf32>
    %5 = vector.shape_cast %4 : vector<8xf32> to vector<8x1xf32>
    %6 = vector.broadcast %5 : vector<8x1xf32> to vector<8x32xf32>
    %7 = arith.subf %3, %6 : vector<8x32xf32>
    %8 = math.exp %7 : vector<8x32xf32>
    %cst_2 = arith.constant dense<0.000000e+00> : vector<8xf32>
    %9 = vector.multi_reduction <add>, %8, %cst_2 [1] : vector<8x32xf32> to vector<8xf32>
    %10 = vector.shape_cast %9 : vector<8xf32> to vector<8x1xf32>
    %11 = arith.mulf %8, %7 : vector<8x32xf32>
    %cst_3 = arith.constant dense<0.000000e+00> : vector<8xf32>
    %12 = vector.multi_reduction <add>, %11, %cst_3 [1] : vector<8x32xf32> to vector<8xf32>
    %13 = vector.shape_cast %12 : vector<8xf32> to vector<8x1xf32>
    %14 = arith.divf %13, %10 : vector<8x1xf32>
    %15 = math.log %10 : vector<8x1xf32>
    %16 = arith.subf %14, %15 : vector<8x1xf32>
    %c1_i32 = arith.constant 1 : i32
    %17 = arith.muli %arg0, %c1_i32 : i32
    %18 = arith.addi %17, %arg1 : i32
    %c8_i32 = arith.constant 8 : i32
    %19 = arith.muli %18, %c8_i32 : i32
    %20 = tpu.iota {dimensions = array<i32: 0>} : vector<8x1xi32>
    %21 = vector.broadcast %19 : i32 to vector<8x1xi32>
    %22 = arith.addi %21, %20 : vector<8x1xi32>
    %c8_i32_4 = arith.constant 8 : i32
    %23 = vector.broadcast %c8_i32_4 : i32 to vector<8x1xi32>
    %24 = arith.cmpi slt, %22, %23 : vector<8x1xi32>
    %cst_5 = arith.constant 0.000000e+00 : f32
    %25 = vector.broadcast %cst_5 : f32 to vector<8x1xf32>
    %26 = arith.select %24, %16, %25 : vector<8x1xi1>, vector<8x1xf32>
    %c0_6 = arith.constant 0 : index
    %c0_7 = arith.constant 0 : index
    %27 = vector.load %arg4[%c0_6, %c0_7] : memref<1x1xf32, #tpu.memory_space<vmem>>, vector<1x1xf32>
    %28 = vector.shape_cast %26 : vector<8x1xf32> to vector<1x8x1xf32>
    %cst_8 = arith.constant dense<0.000000e+00> : vector<1xf32>
    %29 = vector.multi_reduction <add>, %28, %cst_8 [1, 2] : vector<1x8x1xf32> to vector<1xf32>
    %30 = vector.shape_cast %29 : vector<1xf32> to vector<1x1x1xf32>
    %31 = vector.extract %30[0, 0, 0] : f32 from vector<1x1x1xf32>
    %32 = vector.broadcast %31 : f32 to vector<1x1xf32>
    %33 = arith.addf %27, %32 : vector<1x1xf32>
    %c0_9 = arith.constant 0 : index
    %c0_10 = arith.constant 0 : index
    %34 = vector.load %arg4[%c0_9, %c0_10] : memref<1x1xf32, #tpu.memory_space<vmem>>, vector<1x1xf32>
    tpu.vector_store %arg4[%c0_9, %c0_10], %33 {strides = array<i32>} : memref<1x1xf32, #tpu.memory_space<vmem>>, vector<1x1xf32>,
    %c0_i32_11 = arith.constant 0 : i32
    %35 = arith.cmpi eq, %arg1, %c0_i32_11 : i32
    %36 = arith.extui %35 : i1 to i32
    %c0_i32_12 = arith.constant 0 : i32
    %37 = arith.cmpi ne, %36, %c0_i32_12 : i32
    scf.if %37 {
      %c0_13 = arith.constant 0 : index
      %c0_14 = arith.constant 0 : index
      %38 = vector.load %arg4[%c0_13, %c0_14] : memref<1x1xf32, #tpu.memory_space<vmem>>, vector<1x1xf32>
      %c0_15 = arith.constant 0 : index
      %c0_16 = arith.constant 0 : index
      %c0_17 = arith.constant 0 : index
      %39 = vector.load %arg3[%c0_15, %c0_16, %c0_17] : memref<1x1x1xf32, #tpu.memory_space<vmem>>, vector<1x1x1xf32>
      %40 = vector.shape_cast %39 : vector<1x1x1xf32> to vector<1x1xf32>
      %41 = vector.shape_cast %38 : vector<1x1xf32> to vector<1x1x1xf32>
      tpu.vector_store %arg3[%c0_15, %c0_16, %c0_17], %41 {strides = array<i32>} : memref<1x1x1xf32, #tpu.memory_space<vmem>>, vector<1x1x1xf32>,
    } else {
    }
    return
  }
  func.func @transform_0(%arg0: i32, %arg1: i32) -> (i32, i32) {
    %c1_i32 = arith.constant 1 : i32
    %0 = arith.muli %arg0, %c1_i32 : i32
    %1 = arith.addi %0, %arg1 : i32
    %c0_i32 = arith.constant 0 : i32
    %c0_i32_0 = arith.constant 0 : i32
    return %1, %c0_i32 : i32, i32
  }
  func.func @transform_1(%arg0: i32, %arg1: i32) -> (i32, i32, i32) {
    %c0_i32 = arith.constant 0 : i32
    %c0_i32_0 = arith.constant 0 : i32
    %c0_i32_1 = arith.constant 0 : i32
    return %arg0, %c0_i32, %c0_i32_0 : i32, i32, i32
  }
}

</mosaic_0001>

<llo_original>
// kernel: tpu_custom_call.1
$region0: #{tpu_custom_call.1}
  #allocation0 [shape = 'u32[]', space=smem, size = 0x4, offset = 0x4, fixed_abs, tag = 'smem constant byte address 0x4 - core index']
  #allocation1 [shape = 'u32[144,128]{1,0:T(1,128)}', space=vmem, size = 0x12000, scoped, tag = 'internal scratch']
  #allocation2 [shape = 'f32[1,1]{1,0:T(1,128)}', space=vmem, size = 0x200, scoped, tag = 'scratch operand']
  %s0 = inlined_call_operand.hbm [shape: f32[8,32], index: 0, kind: input, shape index: {}]
  %s1 = inlined_call_operand.hbm [shape: f32[1,1,1], index: 1, kind: output, shape index: {}]
  %s2 = sld [smem:[#allocation0]]
  $region26: #{tpu_custom_call.1} parent=0
    _
  %s4 = ssub.s32 1, %s2
  %s5 = scalar_select 0, %s4, %s2
  $region1: #{tpu_custom_call.1} parent=0
    #allocation3 [shape = 'u8[4096]{0}', space=vmem, size = 0x1000, scoped, tag = 'input window, operand 0, single buffered']
    #allocation4 [shape = 's32[1]{0}', space=sflag, size = 0x4, scoped, tag = 'scoped memory for tpu_custom_call.1']
    #allocation5 [shape = 's32[1]{0}', space=sflag, size = 0x4, scoped, tag = 'scoped memory for tpu_custom_call.1']
    #allocation6 [shape = 'u8[512]{0}', space=vmem, size = 0x400, scoped, tag = 'output window, operand 0, single buffered']
    %6 = vsyncpa [#allocation4], 0
    %7 = vsyncpa [#allocation5], 0
    // Predicated region
    $region2: #{tpu_custom_call.1} parent=1 // pred_check
      _
    $region3: #{tpu_custom_call.1} parent=1 // pred_check_branch
      %9 = sbr.rel (0) target = $region5
    $region4: #{tpu_custom_call.1} parent=1 // pred_region
      %s10 = sadd.s32 0, 0
      %s12 = ssub.s32 128, 128
      %13 = vsyncadd [#allocation4], %s12
      %s14 = smul.addr %s10, 128
      %s15 = scalar_lea.hbm %s0, %s14
      %s17 = sshll.u32 [#allocation3], 4
      %s18 = int_to_ptr.vmem [resolvable:$true] %s17
      %20 = dma.hbm_to_vmem [thread:$0]  %s15, 128, %s18, [#allocation4]
    $region5: #{tpu_custom_call.1} parent=1 // pred_fallthru
      _
    // Predicated region
    $region6: #{tpu_custom_call.1} parent=1 // pred_check
      _
    $region7: #{tpu_custom_call.1} parent=1 // pred_check_branch
      %22 = sbr.rel (0) target = $region9
    $region8: #{tpu_custom_call.1} parent=1 // pred_region
      %23 = dma.done [#allocation4], 128
    $region9: #{tpu_custom_call.1} parent=1 // pred_fallthru
      _
    %s24 = sadd.s32 0, 0
    %p25 = scmp.eq.s32.totalorder 0, 0
    // Predicated region
    $region10: #{tpu_custom_call.1} parent=1 // pred_check
      %p26 = pneg %p25
    $region11: #{tpu_custom_call.1} parent=1 // pred_check_branch
      %28 = sbr.rel (%p26) target = $region13
    $region12: #{tpu_custom_call.1} parent=1 // pred_region
      %vm29 = vcmask 0
      %30 = vst.msk [vmem:[#allocation2] sm:$0x1] %vm29, 0.0
    $region13: #{tpu_custom_call.1} parent=1 // pred_fallthru
      _
    %v31 = vld [vmem:[#allocation3] sm:$0xff]
    %vm32 = vcmask 261120
    %v33 = vsel %vm32, %v31, -inf
    %34 = vmax.xlane.f32.xlu0 %v33
    %v35 = vpop.xlane.xlu0 %34
    %v36 = vsub.f32 %v31, %v35
    %v37 = vmul.f32 %v36, 1.442695
    %v38 = vpow.pop %v37
    %v39 = vsel %vm32, %v38, 0.0
    %40 = vadd.xlane.f32.xlu0 %v39
    %v41 = vpop.xlane.xlu0 %40
    %v42 = vmul.f32 %v38, %v36
    %v43 = vsel %vm32, %v42, 0.0
    %44 = vadd.xlane.f32.xlu0 %v43
    %v45 = vpop.xlane.xlu0 %44
    %v46 = vrcp.pop %v41
    %v47 = vmul.f32 %v45, %v46
    %v48 = vlog2.pop %v41
    %v49 = vmul.f32 %v48, 0.6931472
    %v50 = vsub.f32 %v47, %v49
    %s51 = sadd.s32 0, 0
    %s52 = smul.u32 %s51, 8
    %v53 = vlaneseq
    %v54 = vshrl.u32 %v53, 7
    %v55 = vstv %s52
    %v56 = vadd.s32 %v55, %v54
    %vm57 = vcmp.lt.s32.totalorder %v56, 8
    %v58 = vsel %vm57, %v50, 0.0
    %v59 = vld [vmem:[#allocation2] sm:$0x1]
    %vm60 = vcmask 7168
    %v61 = vsel %vm60, %v58, 0.0
    %62 = vadd.xlane.f32.xlu0 %v61
    %v63 = vpop.xlane.xlu0 %62
    %v64 = vrot.slane %v63, 4
    %v65 = vadd.f32 %v63, %v64
    %v66 = vrot.slane %v65, 2
    %v67 = vadd.f32 %v65, %v66
    %v68 = vrot.slane %v67, 1
    %v69 = vadd.f32 %v67, %v68
    %s70 = vtos %v69
    %v71 = vstv %s70
    %v72 = vadd.f32 %v59, %v71
    %vm73 = vcmask 0
    %74 = vst.msk [vmem:[#allocation2] sm:$0x1] %vm73, %v72
    // Predicated region
    $region14: #{tpu_custom_call.1} parent=1 // pred_check
      %p75 = pneg %p25
    $region15: #{tpu_custom_call.1} parent=1 // pred_check_branch
      %77 = sbr.rel (%p75) target = $region17
    $region16: #{tpu_custom_call.1} parent=1 // pred_region
      %v78 = vld [vmem:[#allocation2] sm:$0x1]
      %79 = vst.msk [vmem:[#allocation6] sm:$0x1] %vm73, %v78
    $region17: #{tpu_custom_call.1} parent=1 // pred_fallthru
      _
    // Predicated region
    $region18: #{tpu_custom_call.1} parent=1 // pred_check
      _
    $region19: #{tpu_custom_call.1} parent=1 // pred_check_branch
      %81 = sbr.rel (0) target = $region21
    $region20: #{tpu_custom_call.1} parent=1 // pred_region
      %s83 = ssub.s32 16, 16
      %84 = vsyncadd [#allocation5], %s83
      %s86 = sshll.u32 [#allocation6], 4
      %s87 = int_to_ptr.vmem [resolvable:$true] %s86
      %89 = dma.vmem_to_hbm [thread:$0]  %s87, 16, %s1, [#allocation5]
    $region21: #{tpu_custom_call.1} parent=1 // pred_fallthru
      _
    // Predicated region
    $region22: #{tpu_custom_call.1} parent=1 // pred_check
      _
    $region23: #{tpu_custom_call.1} parent=1 // pred_check_branch
      %91 = sbr.rel (0) target = $region25
    $region24: #{tpu_custom_call.1} parent=1 // pred_region
      %92 = dma.done [#allocation5], 16
    $region25: #{tpu_custom_call.1} parent=1 // pred_fallthru
      _
    %93 = vsyncpa [#allocation4], 1
    %94 = vsyncpa [#allocation5], 1

</llo_original>
